<compile_context>
chip_gen: v6e
topology: v6e:2x2x1
jax: 0.10.0
libtpu: 0.0.40
codegen_flags: <defaults>
</compile_context>

<pallas_src>
import numpy as np
import jax
import jax.numpy as jnp
from jax.experimental import pallas as pl
from jax.experimental.pallas import tpu as pltpu


# ----------------------------- WaveDec kernel --------------------------------
# Single invocation, all channels, h/l fused.  Lane layout of every level's
# activation: [H-half | L-half], each half arranged [pair-even | pair-odd] with
# pooled ordering t*C + c (permutation baked into the weights on the host), so:
#   * AvgPool1d(2)  == 0.5 * (first quarter + second quarter)   (pure VPU)
#   * level_coeffs  == pooled.reshape(B, L, C)                  (free reshape)
# The AvgPool of the previous level is folded into the next level's weights.
def wavedec_kernel(x_ref, w1_ref, b1_ref, w2_ref, b2_ref, w3_ref, b3_ref,
                   xh1_ref, xl1_ref, xh2_ref, xl2_ref, xh3_ref, xl3_ref):
    def level(a_in, w_ref, b_ref):
        z = jnp.dot(a_in, w_ref[...], preferred_element_type=jnp.float32) + b_ref[...]
        return jax.nn.sigmoid(z)

    def pool(a, base, half):
        # lanes [base, base+2*half) are [pair-even | pair-odd]: pairwise mean = half add.
        return 0.5 * (a[:, base:base + half] + a[:, base + half:base + 2 * half])

    x = x_ref[...]

    n1 = w1_ref.shape[1] // 2                      # C*S
    a1 = level(x, w1_ref, b1_ref)                  # (B, 2*C*S)   [H | L]
    xh1_ref[...] = pool(a1, 0, n1 // 2)
    xl1_ref[...] = pool(a1, n1, n1 // 2)

    n2 = w2_ref.shape[1] // 2                      # C*S/2
    a2 = level(a1[:, n1:2 * n1], w2_ref, b2_ref)   # consumes UNpooled L-activation
    xh2_ref[...] = pool(a2, 0, n2 // 2)
    xl2_ref[...] = pool(a2, n2, n2 // 2)

    n3 = w3_ref.shape[1] // 2                      # C*S/4
    a3 = level(a2[:, n2:2 * n2], w3_ref, b3_ref)
    xh3_ref[...] = pool(a3, 0, n3 // 2)
    xl3_ref[...] = pool(a3, n3, n3 // 2)


def wave_dec_all_channels(x, wp):
    B = x.shape[0]
    n1 = wp["w1"].shape[1] // 2
    n2 = wp["w2"].shape[1] // 2
    n3 = wp["w3"].shape[1] // 2
    vm = lambda: pl.BlockSpec(memory_space=pltpu.MemorySpace.VMEM)
    return pl.pallas_call(
        wavedec_kernel,
        out_shape=[
            jax.ShapeDtypeStruct((B, n1 // 2), jnp.float32),
            jax.ShapeDtypeStruct((B, n1 // 2), jnp.float32),
            jax.ShapeDtypeStruct((B, n2 // 2), jnp.float32),
            jax.ShapeDtypeStruct((B, n2 // 2), jnp.float32),
            jax.ShapeDtypeStruct((B, n3 // 2), jnp.float32),
            jax.ShapeDtypeStruct((B, n3 // 2), jnp.float32),
        ],
        in_specs=[vm() for _ in range(7)],
        out_specs=[vm() for _ in range(6)],
    )(x, wp["w1"], wp["b1"], wp["w2"], wp["b2"], wp["w3"], wp["b3"])


# ------------------------------- bi-GRU kernel --------------------------------
# One grid step == one level's bidirectional GRU (PyTorch GRU, num_layers=1,
# bidirectional=True).  All levels share ONE pallas_call; the per-level sequence
# length is read from a scalar-prefetch SMEM array.  Inputs are time-major,
# zero-padded to (Tmax*BP, C) with BP=8 padded batch rows.
def bigru_kernel(tlen_ref, x_ref, wih_ref, bih_ref, whh_ref, bhn_ref,
                 out_ref, hT_ref, xpf_scr, xpb_scr, outf_scr, outb_scr):
    H = whh_ref.shape[0] // 2
    BP = hT_ref.shape[1]
    t_len = tlen_ref[pl.program_id(0)]

    # (a) hoisted input projection for all timesteps and both directions: one
    #     lane-dense matmul; r/z hidden biases are pre-folded into bih on the host.
    xp = (jnp.dot(x_ref[...], wih_ref[...], preferred_element_type=jnp.float32)
          + bih_ref[...])                         # (Tmax*BP, 6H) = [fwd r,z,n | bwd r,z,n]
    xpf_scr[...] = xp[:, :3 * H]                  # split once -> full-width per-step loads
    xpb_scr[...] = xp[:, 3 * H:]

    # TODO(synk): for H >= 64 re-read whh from the ref inside the loop (vreg pressure).
    whh = whh_ref[...]                            # (2H, 6H) block-diag [fwd | bwd]
    bhn = bhn_ref[...]
    bhn_f = bhn[:, :H]
    bhn_b = bhn[:, H:]

    def gates(xp_t, hp_t, bhn_d, h_prev):         # per-direction GRU cell epilogue
        rz = jax.nn.sigmoid(xp_t[:, :2 * H] + hp_t[:, :2 * H])
        r = rz[:, :H]
        z = rz[:, H:]
        n = jnp.tanh(xp_t[:, 2 * H:] + r * (hp_t[:, 2 * H:] + bhn_d))
        return (1.0 - z) * n + z * h_prev

    def step(i, h_cat):
        row_f = pl.multiple_of(i * BP, BP)
        row_b = pl.multiple_of((t_len - 1 - i) * BP, BP)
        xpf = xpf_scr[pl.ds(row_f, BP), :]        # (BP, 3H)
        xpb = xpb_scr[pl.ds(row_b, BP), :]
        # (b) ONE fused (BP,2H) x (2H,6H) recurrent matmul for both directions.
        hp = jnp.dot(h_cat, whh, preferred_element_type=jnp.float32)      # (BP, 6H)
        hf = gates(xpf, hp[:, :3 * H], bhn_f, h_cat[:, :H])
        hb = gates(xpb, hp[:, 3 * H:], bhn_b, h_cat[:, H:])
        # (c) full-sublane (BP=8) per-step stores of the hidden sequences.
        outf_scr[pl.ds(row_f, BP), :] = hf
        outb_scr[pl.ds(row_b, BP), :] = hb
        return jnp.concatenate([hf, hb], axis=-1)

    # Dynamic trip count (per-level T from SMEM) -> no static unroll available here.
    # TODO(synk): unroll-by-2 with an epilogue step once T is static again.
    h_final = jax.lax.fori_loop(0, t_len, step,
                                jnp.zeros((BP, 2 * H), jnp.float32))

    # (d) one lane-dense store of the whole [fwd | bwd] output block (padded time
    #     rows carry stale scratch data and are sliced away on the host).
    out_ref[...] = jnp.concatenate([outf_scr[...], outb_scr[...]], axis=-1)
    hT_ref[0] = h_final[:, :H]
    hT_ref[1] = h_final[:, H:]


def bi_gru_all_levels(t_lens, x_stack, gp, H, BP):
    """Runs all level-GRUs in one pallas_call; grid over levels, T from SMEM."""
    G, TB, C = x_stack.shape
    grid_spec = pltpu.PrefetchScalarGridSpec(
        num_scalar_prefetch=1,
        grid=(G,),
        in_specs=[
            pl.BlockSpec((None, TB, C), lambda g, tl: (g, 0, 0)),
            pl.BlockSpec((None, C, 6 * H), lambda g, tl: (g, 0, 0)),
            pl.BlockSpec((None, 1, 6 * H), lambda g, tl: (g, 0, 0)),
            pl.BlockSpec((None, 2 * H, 6 * H), lambda g, tl: (g, 0, 0)),
            pl.BlockSpec((None, 1, 2 * H), lambda g, tl: (g, 0, 0)),
        ],
        out_specs=[
            pl.BlockSpec((None, TB, 2 * H), lambda g, tl: (g, 0, 0)),
            pl.BlockSpec((None, 2, BP, H), lambda g, tl: (g, 0, 0, 0)),
        ],
        scratch_shapes=[
            pltpu.VMEM((TB, 3 * H), jnp.float32),   # fwd hoisted projections
            pltpu.VMEM((TB, 3 * H), jnp.float32),   # bwd hoisted projections
            pltpu.VMEM((TB, H), jnp.float32),       # fwd hidden sequence
            pltpu.VMEM((TB, H), jnp.float32),       # bwd hidden sequence
        ],
    )
    out, hT = pl.pallas_call(
        bigru_kernel,
        grid_spec=grid_spec,
        out_shape=[
            jax.ShapeDtypeStruct((G, TB, 2 * H), jnp.float32),
            jax.ShapeDtypeStruct((G, 2, BP, H), jnp.float32),
        ],
        compiler_params=pltpu.CompilerParams(dimension_semantics=("parallel",)),
    )(t_lens, x_stack, gp["wih"], gp["bih"], gp["whh"], gp["bhn"])
    return out, hT


# ------------------------------ parameter init --------------------------------
def init_wave_matrix(rng, L, filt):
    max_eps = float(np.min(np.abs(filt)))
    w = rng.standard_normal((L, L)) * 0.1 * max_eps
    for i in range(L):
        fi = 0
        for j in range(i, L):
            if fi < len(filt):
                w[i, j] = filt[fi]
                fi += 1
    return w.astype(np.float32)                    # torch Linear weight layout (out, in)


def pool_matrix_np(L):
    p = np.zeros((L, L // 2), dtype=np.float32)
    for k in range(L // 2):
        p[2 * k, k] = 0.5
        p[2 * k + 1, k] = 0.5
    return p


def block_diag_np(mats):
    rs = sum(m.shape[0] for m in mats)
    cs = sum(m.shape[1] for m in mats)
    out = np.zeros((rs, cs), dtype=np.float32)
    r = c = 0
    for m in mats:
        out[r:r + m.shape[0], c:c + m.shape[1]] = m
        r += m.shape[0]
        c += m.shape[1]
    return out


def act_perm(L, C):
    """Activation lane permutation for one level (per-channel length L, C channels).

    Permuted lane q < N/2 holds original element (c, 2k), lane q + N/2 holds (c, 2k+1),
    with q = k*C + c.  Hence AvgPool1d(2) == 0.5*(first half + second half) and the
    pooled output lane order is k*C + c (reshape to (B, L/2, C) with no transpose).
    """
    N = C * L
    perm = np.empty(N, dtype=np.int64)
    half = N // 2
    k = np.arange(L // 2)
    for c in range(C):
        perm[k * C + c] = c * L + 2 * k
        perm[half + k * C + c] = c * L + 2 * k + 1
    return perm


def init_wave_params(rng, channels, filter_len, S):
    S2, S4 = S // 2, S // 4
    P1, P2 = pool_matrix_np(S), pool_matrix_np(S2)
    perm1, perm2, perm3 = act_perm(S, channels), act_perm(S2, channels), act_perm(S4, channels)

    w1h_c, w1l_c, b1h_c, b1l_c = [], [], [], []
    m2h_c, m2l_c, b2h_c, b2l_c = [], [], [], []
    m3h_c, m3l_c, b3h_c, b3l_c = [], [], [], []
    for _ in range(channels):
        f = rng.standard_normal(filter_len)
        # TODO(synk): init_wave_filter() is not provided in the source; use unit-L2 normalization.
        f = f / np.linalg.norm(f)
        l_filter = f[::-1].copy()
        h_filter = f * np.power(-1.0, np.arange(filter_len))

        def linear(L, filt):
            W = init_wave_matrix(rng, L, filt)                   # (out, in)
            s = 1.0 / np.sqrt(L)
            b = rng.uniform(-s, s, size=L).astype(np.float32)    # nn.Linear default bias init
            return W.T.copy(), b                                 # pre-transposed: x @ W

        w1h, b1h = linear(S, h_filter);  w1l, b1l = linear(S, l_filter)
        w2h, b2h = linear(S2, h_filter); w2l, b2l = linear(S2, l_filter)
        w3h, b3h = linear(S4, h_filter); w3l, b3l = linear(S4, l_filter)

        w1h_c.append(w1h); w1l_c.append(w1l); b1h_c.append(b1h); b1l_c.append(b1l)
        # AvgPool1d(2) of the previous level folded into the next level's weight.
        m2h_c.append(P1 @ w2h); m2l_c.append(P1 @ w2l); b2h_c.append(b2h); b2l_c.append(b2l)
        m3h_c.append(P2 @ w3h); m3l_c.append(P2 @ w3l); b3h_c.append(b3h); b3l_c.append(b3l)

    # Channel-major assemblies -> activation-lane permutation applied on the host.
    W1h = np.concatenate(w1h_c, axis=1)[:, perm1]
    W1l = np.concatenate(w1l_c, axis=1)[:, perm1]
    M2h = block_diag_np(m2h_c)[np.ix_(perm1, perm2)]
    M2l = block_diag_np(m2l_c)[np.ix_(perm1, perm2)]
    M3h = block_diag_np(m3h_c)[np.ix_(perm2, perm3)]
    M3l = block_diag_np(m3l_c)[np.ix_(perm2, perm3)]
    b1h = np.concatenate(b1h_c)[perm1]; b1l = np.concatenate(b1l_c)[perm1]
    b2h = np.concatenate(b2h_c)[perm2]; b2l = np.concatenate(b2l_c)[perm2]
    b3h = np.concatenate(b3h_c)[perm3]; b3l = np.concatenate(b3l_c)[perm3]

    return dict(
        w1=jnp.asarray(np.concatenate([W1h, W1l], axis=1)),      # (S, 2*C*S)     [H | L]
        b1=jnp.asarray(np.concatenate([b1h, b1l])[None, :]),
        w2=jnp.asarray(np.concatenate([M2h, M2l], axis=1)),      # (C*S, C*S)     [H | L]
        b2=jnp.asarray(np.concatenate([b2h, b2l])[None, :]),
        w3=jnp.asarray(np.concatenate([M3h, M3l], axis=1)),      # (C*S/2, C*S/2) [H | L]
        b3=jnp.asarray(np.concatenate([b3h, b3l])[None, :]),
    )


def init_gru_params(rng, C, H, num_grus):
    # TODO(synk): init_rnn(..., 'xavier') is not provided; use PyTorch's default
    #             U(-1/sqrt(H), 1/sqrt(H)) initialisation instead.
    def direction():
        s = 1.0 / np.sqrt(H)
        W_ih = rng.uniform(-s, s, size=(3 * H, C)).astype(np.float32)   # rows [r; z; n]
        W_hh = rng.uniform(-s, s, size=(3 * H, H)).astype(np.float32)
        b_ih = rng.uniform(-s, s, size=3 * H).astype(np.float32)
        b_hh = rng.uniform(-s, s, size=3 * H).astype(np.float32)
        bih = b_ih.copy()
        bih[:2 * H] += b_hh[:2 * H]            # fold b_hr, b_hz into the input bias
        return W_ih.T.copy(), W_hh.T.copy(), bih, b_hh[2 * H:].copy()

    wih_l, bih_l, whh_l, bhn_l = [], [], [], []
    for _ in range(num_grus):
        wf, hf, bf, nf = direction()
        wb, hb, bb, nb = direction()
        wih_l.append(np.concatenate([wf, wb], axis=1))                  # (C, 6H)
        bih_l.append(np.concatenate([bf, bb])[None, :])                 # (1, 6H)
        whh = np.zeros((2 * H, 6 * H), dtype=np.float32)                # block-diag [fwd|bwd]
        whh[:H, :3 * H] = hf
        whh[H:, 3 * H:] = hb
        whh_l.append(whh)
        bhn_l.append(np.concatenate([nf, nb])[None, :])                 # (1, 2H)
    return dict(wih=jnp.asarray(np.stack(wih_l)),
                bih=jnp.asarray(np.stack(bih_l)),
                whh=jnp.asarray(np.stack(whh_l)),
                bhn=jnp.asarray(np.stack(bhn_l)))


# -------------------------- MultiChannelWave.forward --------------------------
def multi_channel_wave_forward(x, wave_params, gru_params, channels, hid_dim, levels=3):
    B = x.shape[0]
    BP = ((B + 7) // 8) * 8                     # batch padded to full sublane groups

    dec = wave_dec_all_channels(x, wave_params)
    # Channel-interleaved lane order -> (B, L, C) is a free reshape (no transpose glue).
    level_coeffs = [o.reshape(B, o.shape[1] // channels, channels) for o in dec]

    gru_inputs = [level_coeffs[2 * i] if i < levels else level_coeffs[2 * levels - 1]
                  for i in range(levels + 1)]
    t_lens = [int(xi.shape[1]) for xi in gru_inputs]
    t_max = max(t_lens)

    def prep(xi):                               # (B, T, C) -> time-major (Tmax*BP, C)
        T = xi.shape[1]
        xt = jnp.transpose(xi, (1, 0, 2))
        xt = jnp.pad(xt, ((0, t_max - T), (0, BP - B), (0, 0)))
        return xt.reshape(t_max * BP, channels)

    # TODO(synk): padding every level to Tmax wastes projection FLOPs at large S;
    #             time-block the projection (or group by T) once that matters.
    x_stack = jnp.stack([prep(xi) for xi in gru_inputs])            # (G, Tmax*BP, C)
    tl = jnp.asarray(t_lens, dtype=jnp.int32)

    out, hT = bi_gru_all_levels(tl, x_stack, gru_params, hid_dim, BP)

    te_outputs, te_hiddens = [], []
    for g, T in enumerate(t_lens):
        o = out[g, :T * BP].reshape(T, BP, 2 * hid_dim)[:, :B]      # drop time/batch padding
        te_outputs.append(jnp.transpose(o, (1, 0, 2)))              # (B, T, 2H), batch_first
        te_hiddens.append(hT[g, :, :B, :])                          # (2, B, H)
    return level_coeffs, te_outputs, te_hiddens


if __name__ == "__main__":
    B, S = 2, 16
    channels, filter_len, levels = 4, 4, 3      # WaveDec hard-codes 3 decomposition levels
    hid_dim = 16

    rng = np.random.default_rng(0)
    wave_params = init_wave_params(rng, channels, filter_len, S)
    gru_params = init_gru_params(rng, channels, hid_dim, levels + 1)

    key = jax.random.PRNGKey(0)
    x = jax.random.normal(key, (B, S), dtype=jnp.float32)

    level_coeffs, te_outputs, te_hiddens = multi_channel_wave_forward(
        x, wave_params, gru_params, channels, hid_dim, levels=levels)
    jax.block_until_ready((level_coeffs, te_outputs, te_hiddens))

    assert [tuple(c.shape) for c in level_coeffs] == [
        (B, S // 2, channels), (B, S // 2, channels),
        (B, S // 4, channels), (B, S // 4, channels),
        (B, S // 8, channels), (B, S // 8, channels)]
    assert [tuple(o.shape) for o in te_outputs] == [
        (B, S // 2, 2 * hid_dim), (B, S // 4, 2 * hid_dim),
        (B, S // 8, 2 * hid_dim), (B, S // 8, 2 * hid_dim)]
    assert all(tuple(h.shape) == (2, B, hid_dim) for h in te_hiddens)
    assert all(bool(jnp.all(jnp.isfinite(c))) for c in level_coeffs)
    assert all(bool(jnp.all(jnp.isfinite(o))) for o in te_outputs)
    assert all(bool(jnp.all(jnp.isfinite(h))) for h in te_hiddens)

    print("KERNEL_OK")
</pallas_src>

<mosaic_0001>
module attributes {stable_mosaic.version = 11 : i64} {
  func.func @wavedec_kernel(%arg0: memref<2x16xf32, #tpu.memory_space<vmem>>, %arg1: memref<16x128xf32, #tpu.memory_space<vmem>>, %arg2: memref<1x128xf32, #tpu.memory_space<vmem>>, %arg3: memref<64x64xf32, #tpu.memory_space<vmem>>, %arg4: memref<1x64xf32, #tpu.memory_space<vmem>>, %arg5: memref<32x32xf32, #tpu.memory_space<vmem>>, %arg6: memref<1x32xf32, #tpu.memory_space<vmem>>, %arg7: memref<2x32xf32, #tpu.memory_space<vmem>>, %arg8: memref<2x32xf32, #tpu.memory_space<vmem>>, %arg9: memref<2x16xf32, #tpu.memory_space<vmem>>, %arg10: memref<2x16xf32, #tpu.memory_space<vmem>>, %arg11: memref<2x8xf32, #tpu.memory_space<vmem>>, %arg12: memref<2x8xf32, #tpu.memory_space<vmem>>) attributes {dimension_semantics = [], scalar_prefetch = 0 : i64, scratch_operands = 0 : i64, tpu.core_type = #tpu.core_type<tc>} {
    %c0 = arith.constant 0 : index
    %c0_0 = arith.constant 0 : index
    %0 = vector.load %arg0[%c0, %c0_0] : memref<2x16xf32, #tpu.memory_space<vmem>>, vector<2x16xf32>
    %c0_1 = arith.constant 0 : index
    %c0_2 = arith.constant 0 : index
    %1 = vector.load %arg1[%c0_1, %c0_2] : memref<16x128xf32, #tpu.memory_space<vmem>>, vector<16x128xf32>
    %cst = arith.constant dense<0.000000e+00> : vector<2x128xf32>
    %2 = tpu.matmul %0, %1, %cst {dimension_numbers = #tpu.dot_dimension_numbers<[1], [0], [0], [1], [0, 0, 1, 1], [], []>} : vector<2x16xf32>, vector<16x128xf32>, vector<2x128xf32> -> vector<2x128xf32>
    %c0_3 = arith.constant 0 : index
    %c0_4 = arith.constant 0 : index
    %3 = vector.load %arg2[%c0_3, %c0_4] : memref<1x128xf32, #tpu.memory_space<vmem>>, vector<1x128xf32>
    %4 = vector.broadcast %3 : vector<1x128xf32> to vector<2x128xf32>
    %5 = arith.addf %2, %4 : vector<2x128xf32>
    %6 = arith.negf %5 : vector<2x128xf32>
    %7 = math.exp %6 : vector<2x128xf32>
    %cst_5 = arith.constant 1.000000e+00 : f32
    %8 = vector.broadcast %cst_5 : f32 to vector<2x128xf32>
    %9 = arith.addf %8, %7 : vector<2x128xf32>
    %10 = arith.divf %8, %9 : vector<2x128xf32>
    %11 = vector.extract_strided_slice %10 {offsets = [0, 0], sizes = [2, 32], strides = [1, 1]} : vector<2x128xf32> to vector<2x32xf32>
    %12 = vector.extract_strided_slice %10 {offsets = [0, 32], sizes = [2, 32], strides = [1, 1]} : vector<2x128xf32> to vector<2x32xf32>
    %13 = arith.addf %11, %12 : vector<2x32xf32>
    %cst_6 = arith.constant 5.000000e-01 : f32
    %14 = vector.broadcast %cst_6 : f32 to vector<2x32xf32>
    %15 = arith.mulf %14, %13 : vector<2x32xf32>
    %c0_7 = arith.constant 0 : index
    %c0_8 = arith.constant 0 : index
    %16 = vector.load %arg7[%c0_7, %c0_8] : memref<2x32xf32, #tpu.memory_space<vmem>>, vector<2x32xf32>
    tpu.vector_store %arg7[%c0_7, %c0_8], %15 {strides = array<i32>} : memref<2x32xf32, #tpu.memory_space<vmem>>, vector<2x32xf32>,
    %17 = vector.extract_strided_slice %10 {offsets = [0, 64], sizes = [2, 32], strides = [1, 1]} : vector<2x128xf32> to vector<2x32xf32>
    %18 = vector.extract_strided_slice %10 {offsets = [0, 96], sizes = [2, 32], strides = [1, 1]} : vector<2x128xf32> to vector<2x32xf32>
    %19 = arith.addf %17, %18 : vector<2x32xf32>
    %cst_9 = arith.constant 5.000000e-01 : f32
    %20 = vector.broadcast %cst_9 : f32 to vector<2x32xf32>
    %21 = arith.mulf %20, %19 : vector<2x32xf32>
    %c0_10 = arith.constant 0 : index
    %c0_11 = arith.constant 0 : index
    %22 = vector.load %arg8[%c0_10, %c0_11] : memref<2x32xf32, #tpu.memory_space<vmem>>, vector<2x32xf32>
    tpu.vector_store %arg8[%c0_10, %c0_11], %21 {strides = array<i32>} : memref<2x32xf32, #tpu.memory_space<vmem>>, vector<2x32xf32>,
    %23 = vector.extract_strided_slice %10 {offsets = [0, 64], sizes = [2, 64], strides = [1, 1]} : vector<2x128xf32> to vector<2x64xf32>
    %c0_12 = arith.constant 0 : index
    %c0_13 = arith.constant 0 : index
    %24 = vector.load %arg3[%c0_12, %c0_13] : memref<64x64xf32, #tpu.memory_space<vmem>>, vector<64x64xf32>
    %cst_14 = arith.constant dense<0.000000e+00> : vector<2x64xf32>
    %25 = tpu.matmul %23, %24, %cst_14 {dimension_numbers = #tpu.dot_dimension_numbers<[1], [0], [0], [1], [0, 0, 1, 1], [], []>} : vector<2x64xf32>, vector<64x64xf32>, vector<2x64xf32> -> vector<2x64xf32>
    %c0_15 = arith.constant 0 : index
    %c0_16 = arith.constant 0 : index
    %26 = vector.load %arg4[%c0_15, %c0_16] : memref<1x64xf32, #tpu.memory_space<vmem>>, vector<1x64xf32>
    %27 = vector.broadcast %26 : vector<1x64xf32> to vector<2x64xf32>
    %28 = arith.addf %25, %27 : vector<2x64xf32>
    %29 = arith.negf %28 : vector<2x64xf32>
    %30 = math.exp %29 : vector<2x64xf32>
    %cst_17 = arith.constant 1.000000e+00 : f32
    %31 = vector.broadcast %cst_17 : f32 to vector<2x64xf32>
    %32 = arith.addf %31, %30 : vector<2x64xf32>
    %33 = arith.divf %31, %32 : vector<2x64xf32>
    %34 = vector.extract_strided_slice %33 {offsets = [0, 0], sizes = [2, 16], strides = [1, 1]} : vector<2x64xf32> to vector<2x16xf32>
    %35 = vector.extract_strided_slice %33 {offsets = [0, 16], sizes = [2, 16], strides = [1, 1]} : vector<2x64xf32> to vector<2x16xf32>
    %36 = arith.addf %34, %35 : vector<2x16xf32>
    %cst_18 = arith.constant 5.000000e-01 : f32
    %37 = vector.broadcast %cst_18 : f32 to vector<2x16xf32>
    %38 = arith.mulf %37, %36 : vector<2x16xf32>
    %c0_19 = arith.constant 0 : index
    %c0_20 = arith.constant 0 : index
    %39 = vector.load %arg9[%c0_19, %c0_20] : memref<2x16xf32, #tpu.memory_space<vmem>>, vector<2x16xf32>
    tpu.vector_store %arg9[%c0_19, %c0_20], %38 {strides = array<i32>} : memref<2x16xf32, #tpu.memory_space<vmem>>, vector<2x16xf32>,
    %40 = vector.extract_strided_slice %33 {offsets = [0, 32], sizes = [2, 16], strides = [1, 1]} : vector<2x64xf32> to vector<2x16xf32>
    %41 = vector.extract_strided_slice %33 {offsets = [0, 48], sizes = [2, 16], strides = [1, 1]} : vector<2x64xf32> to vector<2x16xf32>
    %42 = arith.addf %40, %41 : vector<2x16xf32>
    %cst_21 = arith.constant 5.000000e-01 : f32
    %43 = vector.broadcast %cst_21 : f32 to vector<2x16xf32>
    %44 = arith.mulf %43, %42 : vector<2x16xf32>
    %c0_22 = arith.constant 0 : index
    %c0_23 = arith.constant 0 : index
    %45 = vector.load %arg10[%c0_22, %c0_23] : memref<2x16xf32, #tpu.memory_space<vmem>>, vector<2x16xf32>
    tpu.vector_store %arg10[%c0_22, %c0_23], %44 {strides = array<i32>} : memref<2x16xf32, #tpu.memory_space<vmem>>, vector<2x16xf32>,
    %46 = vector.extract_strided_slice %33 {offsets = [0, 32], sizes = [2, 32], strides = [1, 1]} : vector<2x64xf32> to vector<2x32xf32>
    %c0_24 = arith.constant 0 : index
    %c0_25 = arith.constant 0 : index
    %47 = vector.load %arg5[%c0_24, %c0_25] : memref<32x32xf32, #tpu.memory_space<vmem>>, vector<32x32xf32>
    %cst_26 = arith.constant dense<0.000000e+00> : vector<2x32xf32>
    %48 = tpu.matmul %46, %47, %cst_26 {dimension_numbers = #tpu.dot_dimension_numbers<[1], [0], [0], [1], [0, 0, 1, 1], [], []>} : vector<2x32xf32>, vector<32x32xf32>, vector<2x32xf32> -> vector<2x32xf32>
    %c0_27 = arith.constant 0 : index
    %c0_28 = arith.constant 0 : index
    %49 = vector.load %arg6[%c0_27, %c0_28] : memref<1x32xf32, #tpu.memory_space<vmem>>, vector<1x32xf32>
    %50 = vector.broadcast %49 : vector<1x32xf32> to vector<2x32xf32>
    %51 = arith.addf %48, %50 : vector<2x32xf32>
    %52 = arith.negf %51 : vector<2x32xf32>
    %53 = math.exp %52 : vector<2x32xf32>
    %cst_29 = arith.constant 1.000000e+00 : f32
    %54 = vector.broadcast %cst_29 : f32 to vector<2x32xf32>
    %55 = arith.addf %54, %53 : vector<2x32xf32>
    %56 = arith.divf %54, %55 : vector<2x32xf32>
    %57 = vector.extract_strided_slice %56 {offsets = [0, 0], sizes = [2, 8], strides = [1, 1]} : vector<2x32xf32> to vector<2x8xf32>
    %58 = vector.extract_strided_slice %56 {offsets = [0, 8], sizes = [2, 8], strides = [1, 1]} : vector<2x32xf32> to vector<2x8xf32>
    %59 = arith.addf %57, %58 : vector<2x8xf32>
    %cst_30 = arith.constant 5.000000e-01 : f32
    %60 = vector.broadcast %cst_30 : f32 to vector<2x8xf32>
    %61 = arith.mulf %60, %59 : vector<2x8xf32>
    %c0_31 = arith.constant 0 : index
    %c0_32 = arith.constant 0 : index
    %62 = vector.load %arg11[%c0_31, %c0_32] : memref<2x8xf32, #tpu.memory_space<vmem>>, vector<2x8xf32>
    tpu.vector_store %arg11[%c0_31, %c0_32], %61 {strides = array<i32>} : memref<2x8xf32, #tpu.memory_space<vmem>>, vector<2x8xf32>,
    %63 = vector.extract_strided_slice %56 {offsets = [0, 16], sizes = [2, 8], strides = [1, 1]} : vector<2x32xf32> to vector<2x8xf32>
    %64 = vector.extract_strided_slice %56 {offsets = [0, 24], sizes = [2, 8], strides = [1, 1]} : vector<2x32xf32> to vector<2x8xf32>
    %65 = arith.addf %63, %64 : vector<2x8xf32>
    %cst_33 = arith.constant 5.000000e-01 : f32
    %66 = vector.broadcast %cst_33 : f32 to vector<2x8xf32>
    %67 = arith.mulf %66, %65 : vector<2x8xf32>
    %c0_34 = arith.constant 0 : index
    %c0_35 = arith.constant 0 : index
    %68 = vector.load %arg12[%c0_34, %c0_35] : memref<2x8xf32, #tpu.memory_space<vmem>>, vector<2x8xf32>
    tpu.vector_store %arg12[%c0_34, %c0_35], %67 {strides = array<i32>} : memref<2x8xf32, #tpu.memory_space<vmem>>, vector<2x8xf32>,
    return
  }
}

</mosaic_0001>

<llo_original>
// kernel: tpu_custom_call.1
$region0: #{tpu_custom_call.1}
  #allocation0 [shape = 'u32[]', space=smem, size = 0x4, offset = 0x4, fixed_abs, tag = 'smem constant byte address 0x4 - core index']
  #allocation1 [shape = 'u32[144,128]{1,0:T(1,128)}', space=vmem, size = 0x12000, scoped, tag = 'internal scratch']
  %s0 = inlined_call_operand.hbm [shape: f32[2,16], index: 0, kind: input, shape index: {}]
  %s1 = inlined_call_operand.hbm [shape: f32[16,128], index: 1, kind: input, shape index: {}]
  %s2 = inlined_call_operand.vmem [shape: f32[1,128], index: 2, kind: input, shape index: {}]
  %s3 = inlined_call_operand.hbm [shape: f32[64,64], index: 3, kind: input, shape index: {}]
  %s4 = inlined_call_operand.vmem [shape: f32[1,64], index: 4, kind: input, shape index: {}]
  %s5 = inlined_call_operand.hbm [shape: f32[32,32], index: 5, kind: input, shape index: {}]
  %s6 = inlined_call_operand.vmem [shape: f32[1,32], index: 6, kind: input, shape index: {}]
  %s7 = inlined_call_operand.hbm [shape: f32[2,32], index: 7, kind: output, shape index: {0}]
  %s8 = inlined_call_operand.hbm [shape: f32[2,32], index: 8, kind: output, shape index: {1}]
  %s9 = inlined_call_operand.hbm [shape: f32[2,16], index: 9, kind: output, shape index: {2}]
  %s10 = inlined_call_operand.hbm [shape: f32[2,16], index: 10, kind: output, shape index: {3}]
  %s11 = inlined_call_operand.hbm [shape: f32[2,8], index: 11, kind: output, shape index: {4}]
  %s12 = inlined_call_operand.hbm [shape: f32[2,8], index: 12, kind: output, shape index: {5}]
  %13 = xla_tuple %s7, %s8, %s9, %s10, %s11, %s12
  %s14 = sld [smem:[#allocation0]]
  $region94: #{tpu_custom_call.1} parent=0
    _
  %s16 = ssub.s32 1, %s14
  %s17 = scalar_select 0, %s16, %s14
  $region1: #{tpu_custom_call.1} parent=0
    #allocation2 [shape = 'u8[1024]{0}', space=vmem, size = 0x400, scoped, tag = 'input window, operand 0, single buffered']
    #allocation3 [shape = 's32[1]{0}', space=sflag, size = 0x4, scoped, tag = 'scoped memory for tpu_custom_call.1']
    #allocation4 [shape = 's32[1]{0}', space=sflag, size = 0x4, scoped, tag = 'scoped memory for tpu_custom_call.1']
    #allocation5 [shape = 'u8[8192]{0}', space=vmem, size = 0x2000, scoped, tag = 'input window, operand 1, single buffered']
    #allocation6 [shape = 's32[1]{0}', space=sflag, size = 0x4, scoped, tag = 'scoped memory for tpu_custom_call.1']
    #allocation7 [shape = 'u8[32768]{0}', space=vmem, size = 0x8000, scoped, tag = 'input window, operand 3, single buffered']
    #allocation8 [shape = 'u8[16384]{0}', space=vmem, size = 0x4000, scoped, tag = 'input window, operand 5, single buffered']
    #allocation9 [shape = 's32[1]{0}', space=sflag, size = 0x4, scoped, tag = 'scoped memory for tpu_custom_call.1']
    #allocation10 [shape = 'u8[1024]{0}', space=vmem, size = 0x400, scoped, tag = 'output window, operand 0, single buffered']
    #allocation11 [shape = 'u8[1024]{0}', space=vmem, size = 0x400, scoped, tag = 'output window, operand 1, single buffered']
    #allocation12 [shape = 's32[1]{0}', space=sflag, size = 0x4, scoped, tag = 'scoped memory for tpu_custom_call.1']
    #allocation13 [shape = 'u8[1024]{0}', space=vmem, size = 0x400, scoped, tag = 'output window, operand 2, single buffered']
    #allocation14 [shape = 'u8[1024]{0}', space=vmem, size = 0x400, scoped, tag = 'output window, operand 3, single buffered']
    #allocation15 [shape = 's32[1]{0}', space=sflag, size = 0x4, scoped, tag = 'scoped memory for tpu_custom_call.1']
    #allocation16 [shape = 'u8[1024]{0}', space=vmem, size = 0x400, scoped, tag = 'output window, operand 4, single buffered']
    #allocation17 [shape = 'u8[1024]{0}', space=vmem, size = 0x400, scoped, tag = 'output window, operand 5, single buffered']
    #allocation18 [shape = 's32[1]{0}', space=sflag, size = 0x4, scoped, tag = 'scoped memory for tpu_custom_call.1']
    %18 = vsyncpa [#allocation3], 0
    %19 = vsyncpa [#allocation6], 0
    %20 = vsyncpa [#allocation9], 0
    %21 = vsyncpa [#allocation4], 0
    %22 = vsyncpa [#allocation12], 0
    %23 = vsyncpa [#allocation15], 0
    %24 = vsyncpa [#allocation18], 0
    // Predicated region
    $region2: #{tpu_custom_call.1} parent=1 // pred_check
      _
    $region3: #{tpu_custom_call.1} parent=1 // pred_check_branch
      %26 = sbr.rel (0) target = $region5
    $region4: #{tpu_custom_call.1} parent=1 // pred_region
      %s28 = ssub.s32 32, 32
      %29 = vsyncadd [#allocation3], %s28
      %s31 = sshll.u32 [#allocation2], 4
      %s32 = int_to_ptr.vmem [resolvable:$true] %s31
      %34 = dma.hbm_to_vmem [thread:$0]  %s0, 32, %s32, [#allocation3]
    $region5: #{tpu_custom_call.1} parent=1 // pred_fallthru
      _
    // Predicated region
    $region6: #{tpu_custom_call.1} parent=1 // pred_check
      _
    $region7: #{tpu_custom_call.1} parent=1 // pred_check_branch
      %36 = sbr.rel (0) target = $region9
    $region8: #{tpu_custom_call.1} parent=1 // pred_region
      %s38 = ssub.s32 256, 256
      %39 = vsyncadd [#allocation6], %s38
      %s40 = sshll.u32 [#allocation5], 4
      %s41 = int_to_ptr.vmem [resolvable:$true] %s40
      %46 = dma.hbm_to_vmem [thread:$0]  %s1, 256, %s41, [#allocation6], 128, 128, 8
    $region9: #{tpu_custom_call.1} parent=1 // pred_fallthru
      _
    // Predicated region
    $region10: #{tpu_custom_call.1} parent=1 // pred_check
      _
    $region11: #{tpu_custom_call.1} parent=1 // pred_check_branch
      %48 = sbr.rel (0) target = $region13
    $region12: #{tpu_custom_call.1} parent=1 // pred_region
      _
    $region13: #{tpu_custom_call.1} parent=1 // pred_fallthru
      _
    // Predicated region
    $region14: #{tpu_custom_call.1} parent=1 // pred_check
      _
    $region15: #{tpu_custom_call.1} parent=1 // pred_check_branch
      %50 = sbr.rel (0) target = $region17
    $region16: #{tpu_custom_call.1} parent=1 // pred_region
      %s52 = ssub.s32 1024, 1024
      %53 = vsyncadd [#allocation6], %s52
      %s54 = sshll.u32 [#allocation7], 4
      %s55 = int_to_ptr.vmem [resolvable:$true] %s54
      %60 = dma.hbm_to_vmem [thread:$0]  %s3, 1024, %s55, [#allocation6], 128, 128, 8
    $region17: #{tpu_custom_call.1} parent=1 // pred_fallthru
      _
    // Predicated region
    $region18: #{tpu_custom_call.1} parent=1 // pred_check
      _
    $region19: #{tpu_custom_call.1} parent=1 // pred_check_branch
      %62 = sbr.rel (0) target = $region21
    $region20: #{tpu_custom_call.1} parent=1 // pred_region
      _
    $region21: #{tpu_custom_call.1} parent=1 // pred_fallthru
      _
    // Predicated region
    $region22: #{tpu_custom_call.1} parent=1 // pred_check
      _
    $region23: #{tpu_custom_call.1} parent=1 // pred_check_branch
      %64 = sbr.rel (0) target = $region25
    $region24: #{tpu_custom_call.1} parent=1 // pred_region
      %s66 = ssub.s32 512, 512
      %67 = vsyncadd [#allocation9], %s66
      %s68 = sshll.u32 [#allocation8], 4
      %s69 = int_to_ptr.vmem [resolvable:$true] %s68
      %74 = dma.hbm_to_vmem [thread:$0]  %s5, 512, %s69, [#allocation9], 128, 128, 8
    $region25: #{tpu_custom_call.1} parent=1 // pred_fallthru
      _
    // Predicated region
    $region26: #{tpu_custom_call.1} parent=1 // pred_check
      _
    $region27: #{tpu_custom_call.1} parent=1 // pred_check_branch
      %76 = sbr.rel (0) target = $region29
    $region28: #{tpu_custom_call.1} parent=1 // pred_region
      _
    $region29: #{tpu_custom_call.1} parent=1 // pred_fallthru
      _
    // Predicated region
    $region30: #{tpu_custom_call.1} parent=1 // pred_check
      _
    $region31: #{tpu_custom_call.1} parent=1 // pred_check_branch
      %78 = sbr.rel (0) target = $region33
    $region32: #{tpu_custom_call.1} parent=1 // pred_region
      %79 = dma.done [#allocation3], 32
    $region33: #{tpu_custom_call.1} parent=1 // pred_fallthru
      _
    // Predicated region
    $region34: #{tpu_custom_call.1} parent=1 // pred_check
      _
    $region35: #{tpu_custom_call.1} parent=1 // pred_check_branch
      %81 = sbr.rel (0) target = $region37
    $region36: #{tpu_custom_call.1} parent=1 // pred_region
      %82 = dma.done [#allocation6], 256
    $region37: #{tpu_custom_call.1} parent=1 // pred_fallthru
      _
    // Predicated region
    $region38: #{tpu_custom_call.1} parent=1 // pred_check
      _
    $region39: #{tpu_custom_call.1} parent=1 // pred_check_branch
      %84 = sbr.rel (0) target = $region41
    $region40: #{tpu_custom_call.1} parent=1 // pred_region
      %85 = dma.done [#allocation6], 1024
    $region41: #{tpu_custom_call.1} parent=1 // pred_fallthru
      _
    // Predicated region
    $region42: #{tpu_custom_call.1} parent=1 // pred_check
      _
    $region43: #{tpu_custom_call.1} parent=1 // pred_check_branch
      %87 = sbr.rel (0) target = $region45
    $region44: #{tpu_custom_call.1} parent=1 // pred_region
      %88 = dma.done [#allocation9], 512
    $region45: #{tpu_custom_call.1} parent=1 // pred_fallthru
      _
    %v89 = vld [vmem:[#allocation2] sm:$0x3]
    %v90 = vld [vmem:[#allocation5] sm:$0xff]
    %v91 = vld [vmem:[#allocation5 + $0x8] sm:$0xff]
    %v92 = vld [vmem:[%s2] sm:$0x1]
    %v94 = vlaneseq
    %v95 = vshrl.u32 %v94, 7
    %v96 = vsub.s32 0, %v95
    %v97 = vrot.slane %v92, %v96
    %vm99 = vcmask 130048
    %v101 = vsel %vm99, %v89, 0
    %103 = vmatprep.subr.mxu0 0.0
    %104 = vmatpush1.msra.mxu0 0.0
    %105 = vmatprep.subr.mxu0 0.0
    %106 = vmatpush1.msra.mxu0 0.0
    %107 = vmatprep.subr.mxu0 0.0
    %108 = vmatpush1.msra.mxu0 0.0
    %109 = vmatprep.subr.mxu0 0.0
    %110 = vmatpush1.msra.mxu0 0.0
    %111 = vmatprep.subr.mxu0 0.0
    %112 = vmatpush1.msra.mxu0 0.0
    %113 = vmatprep.subr.mxu0 0.0
    %114 = vmatpush1.msra.mxu0 0.0
    %115 = vmatprep.subr.mxu0 0.0
    %116 = vmatpush1.msra.mxu0 0.0
    %117 = vmatprep.subr.mxu0 0.0
    %118 = vmatpush1.msra.mxu0 0.0
    %119 = vmatprep.subr.mxu0 0.0
    %120 = vmatpush1.msra.mxu0 0.0
    %121 = vmatprep.subr.mxu0 0.0
    %122 = vmatpush1.msra.mxu0 0.0
    %123 = vmatprep.subr.mxu0 0.0
    %124 = vmatpush1.msra.mxu0 0.0
    %125 = vmatprep.subr.mxu0 0.0
    %126 = vmatpush1.msra.mxu0 0.0
    %127 = vmatprep.subr.mxu0 0.0
    %128 = vmatpush1.msra.mxu0 0.0
    %129 = vmatprep.subr.mxu0 0.0
    %130 = vmatpush1.msra.mxu0 0.0
    %131 = vmatprep.subr.mxu0 0.0
    %132 = vmatpush1.msra.mxu0 %v91
    %133 = vmatprep.subr.mxu0 0.0
    %134 = vmatpush1.msra.mxu0 %v90
    %135 = vmatprep.subr.mxu0 0.0
    %136 = vmatpush2.msra.mxu0 0.0
    %137 = vmatprep.subr.mxu0 0.0
    %138 = vmatpush2.msra.mxu0 0.0
    %139 = vmatprep.subr.mxu0 0.0
    %140 = vmatpush2.msra.mxu0 0.0
    %141 = vmatprep.subr.mxu0 0.0
    %142 = vmatpush2.msra.mxu0 0.0
    %143 = vmatprep.subr.mxu0 0.0
    %144 = vmatpush2.msra.mxu0 0.0
    %145 = vmatprep.subr.mxu0 0.0
    %146 = vmatpush2.msra.mxu0 0.0
    %147 = vmatprep.subr.mxu0 0.0
    %148 = vmatpush2.msra.mxu0 0.0
    %149 = vmatprep.subr.mxu0 0.0
    %150 = vmatpush2.msra.mxu0 0.0
    %151 = vmatprep.subr.mxu0 0.0
    %152 = vmatpush2.msra.mxu0 0.0
    %153 = vmatprep.subr.mxu0 0.0
    %154 = vmatpush2.msra.mxu0 0.0
    %155 = vmatprep.subr.mxu0 0.0
    %156 = vmatpush2.msra.mxu0 0.0
    %157 = vmatprep.subr.mxu0 0.0
    %158 = vmatpush2.msra.mxu0 0.0
    %159 = vmatprep.subr.mxu0 0.0
    %160 = vmatpush2.msra.mxu0 0.0
    %161 = vmatprep.subr.mxu0 0.0
    %162 = vmatpush2.msra.mxu0 0.0
    %163 = vmatprep.subr.mxu0 0.0
    %164 = vmatpush2.msra.mxu0 0.0
    %165 = vmatprep.subr.mxu0 0.0
    %166 = vmatpush2.msra.mxu0 0.0
    %167 = vmatprep.mubr.f32.mxu0 0.0
    %168 = vmatmul.mubr.f32.gmra.mxu0 %v101
    %v169 = vpop.f32.mrf.mxu0
    %v170 = vadd.f32 %v97, %v169
    %v171 = vpop.f32.mrf.mxu0
    %172 = vdwg.mxu0
    %v173 = vxor.u32 %v170, 2147483648
    %v174 = vmul.f32 %v173, 1.442695
    %v175 = vpow.pop %v174
    %v176 = vadd.f32 %v175, 1.0
    %v177 = vrcp.pop %v176
    %v178 = vmul.f32 1.0, %v177
    %180 = vrot.lane.b32.xlu0 %v178, 96
    %v181 = vpop.permute.xlu0 %180
    %v183 = vadd.f32 %v178, %v181
    %v184 = vmul.f32 %v183, 0.5
    %vm185 = vcmask 254976
    %186 = vst.msk [vmem:[#allocation10] sm:$0x3] %vm185, %v184
    %188 = vrot.lane.b32.xlu0 %v184, 64
    %v189 = vpop.permute.xlu0 %188
    %191 = vst.msk [vmem:[#allocation11] sm:$0x3] %vm185, %v189
    %v192 = vld [vmem:[#allocation7] sm:$0xff]
    %v193 = vld [vmem:[#allocation7 + $0x8] sm:$0xff]
    %v194 = vld [vmem:[#allocation7 + $0x10] sm:$0xff]
    %v195 = vld [vmem:[#allocation7 + $0x18] sm:$0xff]
    %v196 = vld [vmem:[#allocation7 + $0x20] sm:$0xff]
    %v197 = vld [vmem:[#allocation7 + $0x28] sm:$0xff]
    %v198 = vld [vmem:[#allocation7 + $0x30] sm:$0xff]
    %v199 = vld [vmem:[#allocation7 + $0x38] sm:$0xff]
    %v200 = vld [vmem:[%s4] sm:$0x1]
    %v202 = vlaneseq
    %v203 = vshrl.u32 %v202, 7
    %v204 = vsub.s32 0, %v203
    %v205 = vrot.slane %v200, %v204
    %207 = vrot.lane.b32.xlu0 %v178, 64
    %v208 = vpop.permute.xlu0 %207
    %vm209 = vcmask 523264
    %v210 = vsel %vm209, %v208, 0
    %212 = vmatprep.subr.mxu0 0.0
    %213 = vmatpush1.msra.mxu0 0.0
    %214 = vmatprep.subr.mxu0 0.0
    %215 = vmatpush1.msra.mxu0 0.0
    %216 = vmatprep.subr.mxu0 0.0
    %217 = vmatpush1.msra.mxu0 0.0
    %218 = vmatprep.subr.mxu0 0.0
    %219 = vmatpush1.msra.mxu0 0.0
    %220 = vmatprep.subr.mxu0 0.0
    %221 = vmatpush1.msra.mxu0 0.0
    %222 = vmatprep.subr.mxu0 0.0
    %223 = vmatpush1.msra.mxu0 0.0
    %224 = vmatprep.subr.mxu0 0.0
    %225 = vmatpush1.msra.mxu0 0.0
    %226 = vmatprep.subr.mxu0 0.0
    %227 = vmatpush1.msra.mxu0 0.0
    %228 = vmatprep.subr.mxu0 0.0
    %229 = vmatpush1.msra.mxu0 %v199
    %230 = vmatprep.subr.mxu0 0.0
    %231 = vmatpush1.msra.mxu0 %v198
    %232 = vmatprep.subr.mxu0 0.0
    %233 = vmatpush1.msra.mxu0 %v197
    %234 = vmatprep.subr.mxu0 0.0
    %235 = vmatpush1.msra.mxu0 %v196
    %236 = vmatprep.subr.mxu0 0.0
    %237 = vmatpush1.msra.mxu0 %v195
    %238 = vmatprep.subr.mxu0 0.0
    %239 = vmatpush1.msra.mxu0 %v194
    %240 = vmatprep.subr.mxu0 0.0
    %241 = vmatpush1.msra.mxu0 %v193
    %242 = vmatprep.subr.mxu0 0.0
    %243 = vmatpush1.msra.mxu0 %v192
    %244 = vmatprep.subr.mxu0 0.0
    %245 = vmatpush2.msra.mxu0 0.0
    %246 = vmatprep.subr.mxu0 0.0
    %247 = vmatpush2.msra.mxu0 0.0
    %248 = vmatprep.subr.mxu0 0.0
    %249 = vmatpush2.msra.mxu0 0.0
    %250 = vmatprep.subr.mxu0 0.0
    %251 = vmatpush2.msra.mxu0 0.0
    %252 = vmatprep.subr.mxu0 0.0
    %253 = vmatpush2.msra.mxu0 0.0
    %254 = vmatprep.subr.mxu0 0.0
    %255 = vmatpush2.msra.mxu0 0.0
    %256 = vmatprep.subr.mxu0 0.0
    %257 = vmatpush2.msra.mxu0 0.0
    %258 = vmatprep.subr.mxu0 0.0
    %259 = vmatpush2.msra.mxu0 0.0
    %260 = vmatprep.subr.mxu0 0.0
    %261 = vmatpush2.msra.mxu0 0.0
    %262 = vmatprep.subr.mxu0 0.0
    %263 = vmatpush2.msra.mxu0 0.0
    %264 = vmatprep.subr.mxu0 0.0
    %265 = vmatpush2.msra.mxu0 0.0
    %266 = vmatprep.subr.mxu0 0.0
    %267 = vmatpush2.msra.mxu0 0.0
    %268 = vmatprep.subr.mxu0 0.0
    %269 = vmatpush2.msra.mxu0 0.0
    %270 = vmatprep.subr.mxu0 0.0
    %271 = vmatpush2.msra.mxu0 0.0
    %272 = vmatprep.subr.mxu0 0.0
    %273 = vmatpush2.msra.mxu0 0.0
    %274 = vmatprep.subr.mxu0 0.0
    %275 = vmatpush2.msra.mxu0 0.0
    %276 = vmatprep.mubr.f32.mxu0 0.0
    %277 = vmatmul.mubr.f32.gmra.mxu0 %v210
    %v278 = vpop.f32.mrf.mxu0
    %v279 = vadd.f32 %v205, %v278
    %v280 = vpop.f32.mrf.mxu0
    %281 = vdwg.mxu0
    %v282 = vxor.u32 %v279, 2147483648
    %v283 = vmul.f32 %v282, 1.442695
    %v284 = vpow.pop %v283
    %v285 = vadd.f32 %v284, 1.0
    %v286 = vrcp.pop %v285
    %v287 = vmul.f32 1.0, %v286
    %289 = vrot.lane.b32.xlu0 %v287, 112
    %v290 = vpop.permute.xlu0 %289
    %v292 = vadd.f32 %v287, %v290
    %v293 = vmul.f32 %v292, 0.5
    %vm294 = vcmask 123904
    %295 = vst.msk [vmem:[#allocation13] sm:$0x3] %vm294, %v293
    %297 = vrot.lane.b32.xlu0 %v293, 96
    %v298 = vpop.permute.xlu0 %297
    %300 = vst.msk [vmem:[#allocation14] sm:$0x3] %vm294, %v298
    %v301 = vld [vmem:[#allocation8] sm:$0xff]
    %v302 = vld [vmem:[#allocation8 + $0x8] sm:$0xff]
    %v303 = vld [vmem:[#allocation8 + $0x10] sm:$0xff]
    %v304 = vld [vmem:[#allocation8 + $0x18] sm:$0xff]
    %v305 = vld [vmem:[%s6] sm:$0x1]
    %v307 = vlaneseq
    %v308 = vshrl.u32 %v307, 7
    %v309 = vsub.s32 0, %v308
    %v310 = vrot.slane %v305, %v309
    %312 = vrot.lane.b32.xlu0 %v287, 96
    %v313 = vpop.permute.xlu0 %312
    %vm314 = vcmask 261120
    %v315 = vsel %vm314, %v313, 0
    %317 = vmatprep.subr.mxu0 0.0
    %318 = vmatpush1.msra.mxu0 0.0
    %319 = vmatprep.subr.mxu0 0.0
    %320 = vmatpush1.msra.mxu0 0.0
    %321 = vmatprep.subr.mxu0 0.0
    %322 = vmatpush1.msra.mxu0 0.0
    %323 = vmatprep.subr.mxu0 0.0
    %324 = vmatpush1.msra.mxu0 0.0
    %325 = vmatprep.subr.mxu0 0.0
    %326 = vmatpush1.msra.mxu0 0.0
    %327 = vmatprep.subr.mxu0 0.0
    %328 = vmatpush1.msra.mxu0 0.0
    %329 = vmatprep.subr.mxu0 0.0
    %330 = vmatpush1.msra.mxu0 0.0
    %331 = vmatprep.subr.mxu0 0.0
    %332 = vmatpush1.msra.mxu0 0.0
    %333 = vmatprep.subr.mxu0 0.0
    %334 = vmatpush1.msra.mxu0 0.0
    %335 = vmatprep.subr.mxu0 0.0
    %336 = vmatpush1.msra.mxu0 0.0
    %337 = vmatprep.subr.mxu0 0.0
    %338 = vmatpush1.msra.mxu0 0.0
    %339 = vmatprep.subr.mxu0 0.0
    %340 = vmatpush1.msra.mxu0 0.0
    %341 = vmatprep.subr.mxu0 0.0
    %342 = vmatpush1.msra.mxu0 %v304
    %343 = vmatprep.subr.mxu0 0.0
    %344 = vmatpush1.msra.mxu0 %v303
    %345 = vmatprep.subr.mxu0 0.0
    %346 = vmatpush1.msra.mxu0 %v302
    %347 = vmatprep.subr.mxu0 0.0
    %348 = vmatpush1.msra.mxu0 %v301
    %349 = vmatprep.subr.mxu0 0.0
    %350 = vmatpush2.msra.mxu0 0.0
    %351 = vmatprep.subr.mxu0 0.0
    %352 = vmatpush2.msra.mxu0 0.0
    %353 = vmatprep.subr.mxu0 0.0
    %354 = vmatpush2.msra.mxu0 0.0
    %355 = vmatprep.subr.mxu0 0.0
    %356 = vmatpush2.msra.mxu0 0.0
    %357 = vmatprep.subr.mxu0 0.0
    %358 = vmatpush2.msra.mxu0 0.0
    %359 = vmatprep.subr.mxu0 0.0
    %360 = vmatpush2.msra.mxu0 0.0
    %361 = vmatprep.subr.mxu0 0.0
    %362 = vmatpush2.msra.mxu0 0.0
    %363 = vmatprep.subr.mxu0 0.0
    %364 = vmatpush2.msra.mxu0 0.0
    %365 = vmatprep.subr.mxu0 0.0
    %366 = vmatpush2.msra.mxu0 0.0
    %367 = vmatprep.subr.mxu0 0.0
    %368 = vmatpush2.msra.mxu0 0.0
    %369 = vmatprep.subr.mxu0 0.0
    %370 = vmatpush2.msra.mxu0 0.0
    %371 = vmatprep.subr.mxu0 0.0
    %372 = vmatpush2.msra.mxu0 0.0
    %373 = vmatprep.subr.mxu0 0.0
    %374 = vmatpush2.msra.mxu0 0.0
    %375 = vmatprep.subr.mxu0 0.0
    %376 = vmatpush2.msra.mxu0 0.0
    %377 = vmatprep.subr.mxu0 0.0
    %378 = vmatpush2.msra.mxu0 0.0
    %379 = vmatprep.subr.mxu0 0.0
    %380 = vmatpush2.msra.mxu0 0.0
    %381 = vmatprep.mubr.f32.mxu0 0.0
    %382 = vmatmul.mubr.f32.gmra.mxu0 %v315
    %v383 = vpop.f32.mrf.mxu0
    %v384 = vadd.f32 %v310, %v383
    %v385 = vpop.f32.mrf.mxu0
    %386 = vdwg.mxu0
    %v387 = vxor.u32 %v384, 2147483648
    %v388 = vmul.f32 %v387, 1.442695
    %v389 = vpow.pop %v388
    %v390 = vadd.f32 %v389, 1.0
    %v391 = vrcp.pop %v390
    %v392 = vmul.f32 1.0, %v391
    %394 = vrot.lane.b32.xlu0 %v392, 120
    %v395 = vpop.permute.xlu0 %394
    %v397 = vadd.f32 %v392, %v395
    %v398 = vmul.f32 %v397, 0.5
    %vm399 = vcmask 58368
    %400 = vst.msk [vmem:[#allocation16] sm:$0x3] %vm399, %v398
    %402 = vrot.lane.b32.xlu0 %v398, 112
    %v403 = vpop.permute.xlu0 %402
    %405 = vst.msk [vmem:[#allocation17] sm:$0x3] %vm399, %v403
    // Predicated region
    $region46: #{tpu_custom_call.1} parent=1 // pred_check
      _
    $region47: #{tpu_custom_call.1} parent=1 // pred_check_branch
      %407 = sbr.rel (0) target = $region49
    $region48: #{tpu_custom_call.1} parent=1 // pred_region
      %s409 = ssub.s32 32, 32
      %410 = vsyncadd [#allocation4], %s409
      %s412 = sshll.u32 [#allocation10], 4
      %s413 = int_to_ptr.vmem [resolvable:$true] %s412
      %415 = dma.vmem_to_hbm [thread:$0]  %s413, 32, %s7, [#allocation4]
    $region49: #{tpu_custom_call.1} parent=1 // pred_fallthru
      _
    // Predicated region
    $region50: #{tpu_custom_call.1} parent=1 // pred_check
      _
    $region51: #{tpu_custom_call.1} parent=1 // pred_check_branch
      %417 = sbr.rel (0) target = $region53
    $region52: #{tpu_custom_call.1} parent=1 // pred_region
      %s419 = ssub.s32 32, 32
      %420 = vsyncadd [#allocation12], %s419
      %s422 = sshll.u32 [#allocation11], 4
      %s423 = int_to_ptr.vmem [resolvable:$true] %s422
      %425 = dma.vmem_to_hbm [thread:$0]  %s423, 32, %s8, [#allocation12]
    $region53: #{tpu_custom_call.1} parent=1 // pred_fallthru
      _
    // Predicated region
    $region54: #{tpu_custom_call.1} parent=1 // pred_check
      _
    $region55: #{tpu_custom_call.1} parent=1 // pred_check_branch
      %427 = sbr.rel (0) target = $region57
    $region56: #{tpu_custom_call.1} parent=1 // pred_region
      %s429 = ssub.s32 32, 32
      %430 = vsyncadd [#allocation12], %s429
      %s432 = sshll.u32 [#allocation13], 4
      %s433 = int_to_ptr.vmem [resolvable:$true] %s432
      %435 = dma.vmem_to_hbm [thread:$0]  %s433, 32, %s9, [#allocation12]
    $region57: #{tpu_custom_call.1} parent=1 // pred_fallthru
      _
    // Predicated region
    $region58: #{tpu_custom_call.1} parent=1 // pred_check
      _
    $region59: #{tpu_custom_call.1} parent=1 // pred_check_branch
      %437 = sbr.rel (0) target = $region61
    $region60: #{tpu_custom_call.1} parent=1 // pred_region
      %s439 = ssub.s32 32, 32
      %440 = vsyncadd [#allocation15], %s439
      %s442 = sshll.u32 [#allocation14], 4
      %s443 = int_to_ptr.vmem [resolvable:$true] %s442
      %445 = dma.vmem_to_hbm [thread:$0]  %s443, 32, %s10, [#allocation15]
    $region61: #{tpu_custom_call.1} parent=1 // pred_fallthru
      _
    // Predicated region
    $region62: #{tpu_custom_call.1} parent=1 // pred_check
      _
    $region63: #{tpu_custom_call.1} parent=1 // pred_check_branch
      %447 = sbr.rel (0) target = $region65
    $region64: #{tpu_custom_call.1} parent=1 // pred_region
      %s449 = ssub.s32 32, 32
      %450 = vsyncadd [#allocation15], %s449
      %s452 = sshll.u32 [#allocation16], 4
      %s453 = int_to_ptr.vmem [resolvable:$true] %s452
      %455 = dma.vmem_to_hbm [thread:$0]  %s453, 32, %s11, [#allocation15]
    $region65: #{tpu_custom_call.1} parent=1 // pred_fallthru
      _
    // Predicated region
    $region66: #{tpu_custom_call.1} parent=1 // pred_check
      _
    $region67: #{tpu_custom_call.1} parent=1 // pred_check_branch
      %457 = sbr.rel (0) target = $region69
    $region68: #{tpu_custom_call.1} parent=1 // pred_region
      %s459 = ssub.s32 32, 32
      %460 = vsyncadd [#allocation18], %s459
      %s462 = sshll.u32 [#allocation17], 4
      %s463 = int_to_ptr.vmem [resolvable:$true] %s462
      %465 = dma.vmem_to_hbm [thread:$0]  %s463, 32, %s12, [#allocation18]
    $region69: #{tpu_custom_call.1} parent=1 // pred_fallthru
      _
    // Predicated region
    $region70: #{tpu_custom_call.1} parent=1 // pred_check
      _
    $region71: #{tpu_custom_call.1} parent=1 // pred_check_branch
      %467 = sbr.rel (0) target = $region73
    $region72: #{tpu_custom_call.1} parent=1 // pred_region
      %468 = dma.done [#allocation4], 32
    $region73: #{tpu_custom_call.1} parent=1 // pred_fallthru
      _
    // Predicated region
    $region74: #{tpu_custom_call.1} parent=1 // pred_check
      _
    $region75: #{tpu_custom_call.1} parent=1 // pred_check_branch
      %470 = sbr.rel (0) target = $region77
    $region76: #{tpu_custom_call.1} parent=1 // pred_region
      %471 = dma.done [#allocation12], 32
    $region77: #{tpu_custom_call.1} parent=1 // pred_fallthru
      _
    // Predicated region
    $region78: #{tpu_custom_call.1} parent=1 // pred_check
      _
    $region79: #{tpu_custom_call.1} parent=1 // pred_check_branch
      %473 = sbr.rel (0) target = $region81
    $region80: #{tpu_custom_call.1} parent=1 // pred_region
      %474 = dma.done [#allocation12], 32
    $region81: #{tpu_custom_call.1} parent=1 // pred_fallthru
      _
    // Predicated region
    $region82: #{tpu_custom_call.1} parent=1 // pred_check
      _
    $region83: #{tpu_custom_call.1} parent=1 // pred_check_branch
      %476 = sbr.rel (0) target = $region85
    $region84: #{tpu_custom_call.1} parent=1 // pred_region
      %477 = dma.done [#allocation15], 32
    $region85: #{tpu_custom_call.1} parent=1 // pred_fallthru
      _
    // Predicated region
    $region86: #{tpu_custom_call.1} parent=1 // pred_check
      _
    $region87: #{tpu_custom_call.1} parent=1 // pred_check_branch
      %479 = sbr.rel (0) target = $region89
    $region88: #{tpu_custom_call.1} parent=1 // pred_region
      %480 = dma.done [#allocation15], 32
    $region89: #{tpu_custom_call.1} parent=1 // pred_fallthru
      _
    // Predicated region
    $region90: #{tpu_custom_call.1} parent=1 // pred_check
      _
    $region91: #{tpu_custom_call.1} parent=1 // pred_check_branch
      %482 = sbr.rel (0) target = $region93
    $region92: #{tpu_custom_call.1} parent=1 // pred_region
      %483 = dma.done [#allocation18], 32
    $region93: #{tpu_custom_call.1} parent=1 // pred_fallthru
      _
    %484 = vsyncpa [#allocation3], 1
    %485 = vsyncpa [#allocation6], 1
    %486 = vsyncpa [#allocation9], 1
    %487 = vsyncpa [#allocation4], 1
    %488 = vsyncpa [#allocation12], 1
    %489 = vsyncpa [#allocation15], 1
    %490 = vsyncpa [#allocation18], 1

</llo_original>
